<compile_context>
chip_gen: v7x
topology: tpu7x:2x2x1
jax: 0.10.0
libtpu: 0.0.40
codegen_flags: <defaults>
</compile_context>

<pallas_src>
import jax
import jax.numpy as jnp
from jax import lax
from jax.experimental import pallas as pl
from jax.experimental.pallas import tpu as pltpu


def _lbcnn_matmul_kernel(w_ref, p_ref, o_ref):
    # w_ref: (Cout, K)         packed ternary weights (same block every step)
    # p_ref: (K, BN*P_pad)     im2col patches for BN images (lane-dense)
    # o_ref: (Cout, BN*P_pad)  output block (lane dim multiple of 128)
    o_ref[...] = jnp.dot(
        w_ref[...], p_ref[...], preferred_element_type=jnp.float32
    ).astype(o_ref.dtype)


def lbcnn_pallas(x, weight, *, stride=1, padding=0, dilation=1, groups=1,
                 compute_dtype=jnp.bfloat16,
                 vmem_budget_bytes=24 * 1024 * 1024):
    """x: (N, Cin, H, W), weight: (Cout, Cin, kH, kW) -> (N, Cout, Ho, Wo) f32."""
    assert groups == 1, "grouped conv not implemented"
    # TODO(synk): groups > 1 would need block-diagonal weight packing.
    N, Cin, H, W = x.shape
    Cout, Cin_w, kH, kW = weight.shape
    assert Cin_w == Cin

    if padding:
        # TODO(synk): fold padding into the im2col slices to skip this HBM round trip.
        x = jnp.pad(x, ((0, 0), (0, 0), (padding, padding), (padding, padding)))
        H, W = H + 2 * padding, W + 2 * padding

    Ho = (H - dilation * (kH - 1) - 1) // stride + 1
    Wo = (W - dilation * (kW - 1) - 1) // stride + 1
    P = Ho * Wo
    K = kH * kW * Cin
    P_pad = ((P + 127) // 128) * 128            # lane-dense output columns

    # ---- wrapper-side im2col: feature order (dy, dx, ci), matches weight pack ----
    cols = []
    for dy in range(kH):
        for dx in range(kW):
            y0, x0 = dy * dilation, dx * dilation
            tap = x[:, :,
                    y0:y0 + stride * (Ho - 1) + 1:stride,
                    x0:x0 + stride * (Wo - 1) + 1:stride]            # (N, Cin, Ho, Wo)
            cols.append(tap)
    patches = jnp.stack(cols, axis=1).reshape(N, K, P).astype(compute_dtype)

    # ---- batch blocking: amortize per-step overhead; keep >= 2 steps for v7x ----
    itemsize = jnp.dtype(compute_dtype).itemsize
    per_img = K * P_pad * itemsize + Cout * P_pad * 4
    bn_cap = max(1, vmem_budget_bytes // (2 * per_img))   # x2: double buffering
    BN = max(1, min(N, bn_cap, -(-N // 2)))               # grid length >= 2 when N >= 2
    NB = -(-N // BN)
    Npad = NB * BN
    # TODO(synk): if a single image's (K, P_pad) block ever exceeds VMEM
    # (very large Cin / feature maps), add a spatial grid axis tiling P_pad.

    patches = jnp.pad(patches, ((0, Npad - N), (0, 0), (0, P_pad - P)))
    # (Npad, K, P_pad) -> (K, Npad*P_pad): column index = n*P_pad + p
    patches2d = jnp.transpose(patches, (1, 0, 2)).reshape(K, Npad * P_pad)

    # weight: (Cout, Cin, kH, kW) -> (Cout, K) with feature order (dy, dx, ci)
    w_packed = jnp.transpose(weight, (0, 2, 3, 1)).reshape(Cout, K).astype(compute_dtype)

    out2d = pl.pallas_call(
        _lbcnn_matmul_kernel,
        out_shape=jax.ShapeDtypeStruct((Cout, Npad * P_pad), jnp.float32),
        grid=(NB,),
        in_specs=[
            pl.BlockSpec((Cout, K), lambda i: (0, 0)),
            pl.BlockSpec((K, BN * P_pad), lambda i: (0, i)),
        ],
        out_specs=pl.BlockSpec((Cout, BN * P_pad), lambda i: (0, i)),
        compiler_params=pltpu.CompilerParams(
            dimension_semantics=("parallel",)),
    )(w_packed, patches2d)

    # Cheap XLA epilogue: drop lane/batch padding and restore NCHW.
    out = out2d.reshape(Cout, Npad, P_pad)[:, :N, :P]
    return jnp.transpose(out, (1, 0, 2)).reshape(N, Cout, Ho, Wo)


def make_lbcnn_weight(key, out_channels, in_channels, kernel_size):
    """Replicates the LBCNN weight construction: bernoulli(+1/-1) with ~half zeroed."""
    n = out_channels * in_channels * kernel_size * kernel_size
    k1, k2, k3 = jax.random.split(key, 3)
    probs = jax.random.uniform(k1, (n,), minval=0.0, maxval=1.0)
    w = jnp.where(jax.random.bernoulli(k2, probs), 1.0, -1.0).astype(jnp.float32)
    perm = jax.random.permutation(k3, n)
    w = w.at[perm[1:n // 2]].set(0.0)    # matches the loop `for i in range(1, n//2)`
    return w.reshape(out_channels, in_channels, kernel_size, kernel_size)


def lbcnn_reference(x, weight):
    """Pure-JAX reference of the PyTorch forward: conv2d, no bias, VALID padding."""
    return lax.conv_general_dilated(
        x, weight, window_strides=(1, 1), padding="VALID",
        dimension_numbers=("NCHW", "OIHW", "NCHW"),
        precision=lax.Precision.HIGHEST)


if __name__ == "__main__":
    key = jax.random.PRNGKey(0)
    kx, kw = jax.random.split(key)

    N, Cin, Cout, H, W, Ksz = 2, 4, 8, 16, 16, 3
    x = jax.random.normal(kx, (N, Cin, H, W), jnp.float32)
    weight = make_lbcnn_weight(kw, Cout, Cin, Ksz)

    out = jax.block_until_ready(lbcnn_pallas(x, weight))
    ref = jax.block_until_ready(lbcnn_reference(x, weight))

    assert out.shape == (N, Cout, H - Ksz + 1, W - Ksz + 1)
    # bf16 operands (ternary weights exact) + f32 accumulation: only activations
    # lose precision, so use a correspondingly looser tolerance than pure-f32.
    assert jnp.allclose(out, ref, rtol=5e-2, atol=5e-2), \
        f"max abs diff {jnp.max(jnp.abs(out - ref))}"

    print("KERNEL_OK")
</pallas_src>

<mosaic_0001>
module attributes {stable_mosaic.version = 11 : i64} {
  func.func @_lbcnn_matmul_kernel(%arg0: i32, %arg1: memref<8x36xbf16, #tpu.memory_space<vmem>>, %arg2: memref<36x256xbf16, #tpu.memory_space<vmem>>, %arg3: memref<8x256xf32, #tpu.memory_space<vmem>>) attributes {dimension_semantics = [#tpu.dimension_semantics<parallel>], iteration_bounds = array<i64: 2>, scalar_prefetch = 0 : i64, scratch_operands = 0 : i64, tpu.core_type = #tpu.core_type<tc>, window_params = [{pipeline_mode = #tpu.pipeline_mode<synchronous>, transform_indices = @transform_0, window_bounds = array<i64: 8, 36>}, {transform_indices = @transform_1, window_bounds = array<i64: 36, 256>}, {transform_indices = @transform_2, window_bounds = array<i64: 8, 256>}]} {
    %c0 = arith.constant 0 : index
    %c0_0 = arith.constant 0 : index
    %0 = vector.load %arg1[%c0, %c0_0] : memref<8x36xbf16, #tpu.memory_space<vmem>>, vector<8x36xbf16>
    %c0_1 = arith.constant 0 : index
    %c0_2 = arith.constant 0 : index
    %1 = vector.load %arg2[%c0_1, %c0_2] : memref<36x256xbf16, #tpu.memory_space<vmem>>, vector<36x256xbf16>
    %cst = arith.constant dense<0.000000e+00> : vector<8x256xf32>
    %2 = tpu.matmul %0, %1, %cst {dimension_numbers = #tpu.dot_dimension_numbers<[1], [0], [0], [1], [0, 0, 1, 1], [], []>} : vector<8x36xbf16>, vector<36x256xbf16>, vector<8x256xf32> -> vector<8x256xf32>
    %c0_3 = arith.constant 0 : index
    %c0_4 = arith.constant 0 : index
    %3 = vector.load %arg3[%c0_3, %c0_4] : memref<8x256xf32, #tpu.memory_space<vmem>>, vector<8x256xf32>
    tpu.vector_store %arg3[%c0_3, %c0_4], %2 {strides = array<i32>} : memref<8x256xf32, #tpu.memory_space<vmem>>, vector<8x256xf32>,
    return
  }
  func.func @transform_0(%arg0: i32) -> (i32, i32) {
    %c0_i32 = arith.constant 0 : i32
    %c0_i32_0 = arith.constant 0 : i32
    %c0_i32_1 = arith.constant 0 : i32
    return %c0_i32, %c0_i32_0 : i32, i32
  }
  func.func @transform_1(%arg0: i32) -> (i32, i32) {
    %c0_i32 = arith.constant 0 : i32
    %c0_i32_0 = arith.constant 0 : i32
    return %c0_i32, %arg0 : i32, i32
  }
  func.func @transform_2(%arg0: i32) -> (i32, i32) {
    %c0_i32 = arith.constant 0 : i32
    %c0_i32_0 = arith.constant 0 : i32
    return %c0_i32, %arg0 : i32, i32
  }
}

</mosaic_0001>

<llo_original>
// kernel: tpu_custom_call.1
$region0: #{tpu_custom_call.1}
  #allocation0 [shape = 'u32[]', space=smem, size = 0x4, offset = 0x4, fixed_abs, tag = 'smem constant byte address 0x4 - core index']
  #allocation1 [shape = 'u32[144,128]{1,0:T(1,128)}', space=vmem, size = 0x12000, scoped, tag = 'internal scratch']
  %s0 = inlined_call_operand.hbm [shape: bf16[8,36], index: 0, kind: input, shape index: {}]
  %s1 = inlined_call_operand.hbm [shape: bf16[36,512], index: 1, kind: input, shape index: {}]
  %s2 = inlined_call_operand.hbm [shape: f32[8,512], index: 2, kind: output, shape index: {}]
  %s3 = sld [smem:[#allocation0]]
  $region49: #{tpu_custom_call.1} parent=0
    _
  %s5 = ssub.s32 1, %s3
  %s6 = scalar_select 0, %s5, %s3
  $region1: #{tpu_custom_call.1} parent=0
    #allocation2 [shape = 'u8[2048]{0}', space=vmem, size = 0x800, scoped, tag = 'input window, operand 0, single buffered']
    #allocation3 [shape = 's32[2]{0}', space=sflag, size = 0x8, scoped, tag = 'scoped memory for tpu_custom_call.1']
    #allocation4 [shape = 's32[2]{0}', space=sflag, size = 0x8, scoped, tag = 'scoped memory for tpu_custom_call.1']
    #allocation5 [shape = 'u8[40960]{0}', space=vmem, size = 0xa000, scoped, tag = 'input window, operand 1']
    #allocation6 [shape = 's32[2]{0}', space=sflag, size = 0x8, scoped, tag = 'scoped memory for tpu_custom_call.1']
    #allocation7 [shape = 'u8[16384]{0}', space=vmem, size = 0x4000, scoped, tag = 'output window, operand 0']
    %7 = vsyncpa [#allocation3], 0
    %8 = vsyncpa [#allocation6], 0
    %s9 = scalar_lea.sflag [#allocation6], 1
    %10 = vsyncpa %s9, 0
    %11 = vsyncpa [#allocation4], 0
    %s12 = scalar_lea.sflag [#allocation4], 1
    %13 = vsyncpa %s12, 0
    loop: start=0, step=1, limit=4
    $region2: #{tpu_custom_call.1} parent=1 // loop_pre_header
      _
    $region3: #{tpu_custom_call.1} parent=1 // loop_header
      %s15 = sphi 0, %s19
      %p16 = scmp.ge.s32.totalorder %s15, 4
      %s23 = sphi 0, %s23
      %s25 = sphi 0, %s23
      %s26 = sphi 0, %s25
      %s40 = sphi 0, %s26
      %s46 = sphi 0, %s48
      %s49 = sphi 0, %s46
      %s50 = sphi 0, %s49
      %s66 = sphi 0, %s50
      %s72 = sphi 0, %s74
      %s75 = sphi 0, %s72
      %s76 = sphi 0, %s75
      %s92 = sphi 0, %s76
    $region4: #{tpu_custom_call.1} parent=1 // loop_header_branch
      %18 = sbr.rel (%p16) target = $region8
    $region5: #{tpu_custom_call.1} parent=1 // loop_body
      %s20 = ssub.s32 %s15, 1
      %s21 = ssub.s32 %s15, 2
      %s22 = sadd.s32 %s15, 1
      %s24 = sadd.s32 %s23, 1
      %p27 = scmp.eq.s32.totalorder %s15, 1
      %p28 = scmp.ne.s32.totalorder %s23, %s25
      %p29 = scmp.eq.s32.totalorder %s15, 0
      %p30 = por %p28, %p29
      %p31 = scmp.ne.s32.totalorder %s23, %s25
      %p32 = scmp.eq.s32.totalorder %s20, 1
      %p33 = por %p31, %p32
      %p34 = scmp.ne.s32.totalorder %s25, %s26
      %p35 = scmp.eq.s32.totalorder %s20, 0
      %p36 = por %p34, %p35
      %p37 = scmp.ne.s32.totalorder %s25, %s26
      %p38 = scmp.eq.s32.totalorder %s21, 1
      %p39 = por %p37, %p38
      %p41 = scmp.ne.s32.totalorder %s26, %s40
      %p42 = scmp.eq.s32.totalorder %s21, 0
      %p43 = por %p41, %p42
      %s44 = ssub.s32 %s15, %s22
      %p45 = scmp.eq.s32.totalorder %s44, 0
      %s47 = sadd.s32 %s46, 1
      %s48 = scalar_select %p45, %s46, %s47
      %p51 = pneg %p45
      %p52 = scmp.eq.s32.totalorder %s15, 1
      %p53 = por %p51, %p52
      %p54 = scmp.ne.s32.totalorder %s46, %s49
      %p55 = scmp.eq.s32.totalorder %s15, 0
      %p56 = por %p54, %p55
      %p57 = scmp.ne.s32.totalorder %s46, %s49
      %p58 = scmp.eq.s32.totalorder %s20, 1
      %p59 = por %p57, %p58
      %p60 = scmp.ne.s32.totalorder %s49, %s50
      %p61 = scmp.eq.s32.totalorder %s20, 0
      %p62 = por %p60, %p61
      %p63 = scmp.ne.s32.totalorder %s49, %s50
      %p64 = scmp.eq.s32.totalorder %s21, 1
      %p65 = por %p63, %p64
      %p67 = scmp.ne.s32.totalorder %s50, %s66
      %p68 = scmp.eq.s32.totalorder %s21, 0
      %p69 = por %p67, %p68
      %s70 = ssub.s32 %s15, %s22
      %p71 = scmp.eq.s32.totalorder %s70, 0
      %s73 = sadd.s32 %s72, 1
      %s74 = scalar_select %p71, %s72, %s73
      %p77 = pneg %p71
      %p78 = scmp.eq.s32.totalorder %s15, 1
      %p79 = por %p77, %p78
      %p80 = scmp.ne.s32.totalorder %s72, %s75
      %p81 = scmp.eq.s32.totalorder %s15, 0
      %p82 = por %p80, %p81
      %p83 = scmp.ne.s32.totalorder %s72, %s75
      %p84 = scmp.eq.s32.totalorder %s20, 1
      %p85 = por %p83, %p84
      %p86 = scmp.ne.s32.totalorder %s75, %s76
      %p87 = scmp.eq.s32.totalorder %s20, 0
      %p88 = por %p86, %p87
      %p89 = scmp.ne.s32.totalorder %s75, %s76
      %p90 = scmp.eq.s32.totalorder %s21, 1
      %p91 = por %p89, %p90
      %p93 = scmp.ne.s32.totalorder %s76, %s92
      %p94 = scmp.eq.s32.totalorder %s21, 0
      %p95 = por %p93, %p94
      %p96 = scmp.le.s32.totalorder 1, %s15
      %p97 = scmp.lt.s32.totalorder %s15, 3
      %p98 = pnand %p96, %p97
      %p99 = pneg %p98
      // Predicated region
      $region9: #{tpu_custom_call.1} parent=5 // pred_check
        _
      $region10: #{tpu_custom_call.1} parent=5 // pred_check_branch
        %101 = sbr.rel (%p98) target = $region12
      $region11: #{tpu_custom_call.1} parent=5 // pred_region
        %s102 = ssub.s32 %s15, 1
        // Predicated region
        $region13: #{tpu_custom_call.1} parent=11 // pred_check
          %p103 = pneg %p36
        $region14: #{tpu_custom_call.1} parent=11 // pred_check_branch
          %105 = sbr.rel (%p103) target = $region16
        $region15: #{tpu_custom_call.1} parent=11 // pred_region
          %s107 = ssub.s32 64, 64
          %108 = vsyncadd [#allocation3], %s107
          %s110 = sshll.u32 [#allocation2], 4
          %s111 = int_to_ptr.vmem [resolvable:$true] %s110
          %113 = dma.hbm_to_vmem [thread:$0]  %s0, 64, %s111, [#allocation3]
        $region16: #{tpu_custom_call.1} parent=11 // pred_fallthru
          _
      $region12: #{tpu_custom_call.1} parent=5 // pred_fallthru
        _
      %p114 = scmp.lt.s32.totalorder %s15, 2
      // Predicated region
      $region17: #{tpu_custom_call.1} parent=5 // pred_check
        %p115 = pneg %p114
      $region18: #{tpu_custom_call.1} parent=5 // pred_check_branch
        %117 = sbr.rel (%p115) target = $region20
      $region19: #{tpu_custom_call.1} parent=5 // pred_region
        // Predicated region
        $region21: #{tpu_custom_call.1} parent=19 // pred_check
          %p118 = pneg %p56
        $region22: #{tpu_custom_call.1} parent=19 // pred_check_branch
          %120 = sbr.rel (%p118) target = $region24
        $region23: #{tpu_custom_call.1} parent=19 // pred_region
          %s121 = sand.u32 %s46, 1
          %s122 = scalar_lea.sflag [#allocation6], %s121
          %s123 = sand.u32 %s46, 1
          %s124 = smul.addr %s123, 40
          %s125 = scalar_lea.vmem [#allocation5], %s124
          %s126 = smul.u32 2, %s15
          %s128 = ssub.s32 640, 640
          %129 = vsyncadd %s122, %s128
          %s130 = smul.addr %s126, 64
          %s131 = scalar_lea.hbm %s1, %s130
          %s132 = sshll.u32 %s125, 4
          %s133 = int_to_ptr.vmem [resolvable:$true] %s132
          %138 = dma.hbm_to_vmem [thread:$0]  %s131, 640, %s133, %s122, 256, 128, 8
        $region24: #{tpu_custom_call.1} parent=19 // pred_fallthru
          _
      $region20: #{tpu_custom_call.1} parent=5 // pred_fallthru
        _
      %p139 = scmp.le.s32.totalorder 1, %s15
      %p140 = scmp.lt.s32.totalorder %s15, 3
      %p141 = pnand %p139, %p140
      %p142 = pneg %p141
      // Predicated region
      $region25: #{tpu_custom_call.1} parent=5 // pred_check
        _
      $region26: #{tpu_custom_call.1} parent=5 // pred_check_branch
        %144 = sbr.rel (%p141) target = $region28
      $region27: #{tpu_custom_call.1} parent=5 // pred_region
        %s145 = ssub.s32 %s15, 1
        // Predicated region
        $region29: #{tpu_custom_call.1} parent=27 // pred_check
          %p146 = pneg %p36
        $region30: #{tpu_custom_call.1} parent=27 // pred_check_branch
          %148 = sbr.rel (%p146) target = $region32
        $region31: #{tpu_custom_call.1} parent=27 // pred_region
          %149 = dma.done [#allocation3], 64
        $region32: #{tpu_custom_call.1} parent=27 // pred_fallthru
          _
        %s150 = sand.u32 %s49, 1
        %s151 = scalar_lea.sflag [#allocation6], %s150
        %s152 = sand.u32 %s49, 1
        %s153 = smul.addr %s152, 40
        %s154 = scalar_lea.vmem [#allocation5], %s153
        // Predicated region
        $region33: #{tpu_custom_call.1} parent=27 // pred_check
          %p155 = pneg %p62
        $region34: #{tpu_custom_call.1} parent=27 // pred_check_branch
          %157 = sbr.rel (%p155) target = $region36
        $region35: #{tpu_custom_call.1} parent=27 // pred_region
          %158 = dma.done %s151, 640
        $region36: #{tpu_custom_call.1} parent=27 // pred_fallthru
          _
        %p159 = pneg %p36
        %p160 = pneg %p33
        %s161 = sand.u32 %s49, 1
        %s162 = scalar_lea.sflag [#allocation6], %s161
        %s163 = sand.u32 %s49, 1
        %s164 = smul.addr %s163, 40
        %s165 = scalar_lea.vmem [#allocation5], %s164
        %p166 = pneg %p62
        %p167 = pneg %p59
        %p168 = pneg %p88
        %p169 = pneg %p85
        %s170 = sand.u32 %s75, 1
        %s171 = scalar_lea.sflag [#allocation4], %s170
        %s172 = sand.u32 %s75, 1
        %s173 = smul.addr %s172, 16
        %s174 = scalar_lea.vmem [#allocation7], %s173
        %s175 = smul.u32 2, %s20
        %s176 = smul.u32 2, %s20
        %v178 = vld [vmem:[#allocation2] sm:$0xf]
        %v179 = vld [vmem:[%s154] sm:$0xff]
        %v180 = vld [vmem:[%s154 + $0x8] sm:$0xff]
        %v181 = vld [vmem:[%s154 + $0x10] sm:$0xff]
        %v182 = vld [vmem:[%s154 + $0x18] sm:$0xff]
        %v183 = vld [vmem:[%s154 + $0x20] sm:$0x33]
        %v189 = vunpack.c.l.b16 %v179
        %v190 = vunpack.c.h.b16 %v179
        %v191 = vunpack.c.l.b16 %v180
        %v192 = vunpack.c.h.b16 %v180
        %v193 = vunpack.c.l.b16 %v181
        %v194 = vunpack.c.h.b16 %v181
        %v195 = vunpack.c.l.b16 %v182
        %v196 = vunpack.c.h.b16 %v182
        %v197 = vunpack.c.l.b16 %v183
        %v198 = vunpack.c.h.b16 %v183
        %v199 = vpack.c.b16 %v191, %v189
        %v200 = vpack.c.b16 %v192, %v190
        %v201 = vpack.c.b16 %v195, %v193
        %v202 = vpack.c.b16 %v196, %v194
        %v203 = vpack.c.b16 %v197, %v197
        %v204 = vpack.c.b16 %v198, %v198
        %vm209 = vcmask 293888
        %v211 = vsel %vm209, %v178, 0
        %vm213 = vcmask 1041408
        %v215 = vsel %vm213, %v203, 0
        %v218 = vsel %vm213, %v204, 0
        %220 = vmatprep.subr.bf16.mxu0 %v200
        %221 = vmatpush1.bf16.msra.mxu0 %v199
        %222 = vmatprep.subr.bf16.mxu0 %v202
        %223 = vmatpush1.bf16.msra.mxu0 %v201
        %224 = vmatprep.subr.bf16.mxu0 %v218
        %225 = vmatpush1.bf16.msra.mxu0 %v215
        %226 = vmatprep.subr.bf16.mxu0 0
        %227 = vmatpush1.bf16.msra.mxu0 0
        %228 = vmatprep.subr.bf16.mxu0 0
        %229 = vmatpush1.bf16.msra.mxu0 0
        %230 = vmatprep.subr.bf16.mxu0 0
        %231 = vmatpush1.bf16.msra.mxu0 0
        %232 = vmatprep.subr.bf16.mxu0 0
        %233 = vmatpush1.bf16.msra.mxu0 0
        %234 = vmatprep.subr.bf16.mxu0 0
        %235 = vmatpush1.bf16.msra.mxu0 0
        %236 = vmatprep.subr.bf16.mxu0 0
        %237 = vmatpush1.bf16.msra.mxu0 0
        %238 = vmatprep.subr.bf16.mxu0 0
        %239 = vmatpush1.bf16.msra.mxu0 0
        %240 = vmatprep.subr.bf16.mxu0 0
        %241 = vmatpush1.bf16.msra.mxu0 0
        %242 = vmatprep.subr.bf16.mxu0 0
        %243 = vmatpush1.bf16.msra.mxu0 0
        %244 = vmatprep.subr.bf16.mxu0 0
        %245 = vmatpush1.bf16.msra.mxu0 0
        %246 = vmatprep.subr.bf16.mxu0 0
        %247 = vmatpush1.bf16.msra.mxu0 0
        %248 = vmatprep.subr.bf16.mxu0 0
        %249 = vmatpush1.bf16.msra.mxu0 0
        %250 = vmatprep.subr.bf16.mxu0 0
        %251 = vmatpush1.bf16.msra.mxu0 0
        %252 = vmatprep.mubr.bf16.mxu0 0
        %253 = vmatmul.mubr.bf16.gmra.mrb[0].mxu0 %v211
        %v254 = vpop.f32.mrb[0].mxu0
        %v255 = vadd.f32 0.0, %v254
        %v256 = vpop.f32.mrb[0].mxu0
        %v257 = vadd.f32 0.0, %v256
        %v258 = vpop.f32.mrb[0].mxu0
        %v259 = vpop.f32.mrb[0].mxu0
        %260 = vdwg.mxu0
        %261 = vst [vmem:[%s174] sm:$0xff] %v255
        %262 = vst [vmem:[%s174 + $0x8] sm:$0xff] %v257
        %s263 = sand.u32 %s75, 1
        %s264 = scalar_lea.sflag [#allocation4], %s263
        %s265 = sand.u32 %s75, 1
        %s266 = smul.addr %s265, 16
        %s267 = scalar_lea.vmem [#allocation7], %s266
        // Predicated region
        $region37: #{tpu_custom_call.1} parent=27 // pred_check
          %p268 = pneg %p85
        $region38: #{tpu_custom_call.1} parent=27 // pred_check_branch
          %270 = sbr.rel (%p268) target = $region40
        $region39: #{tpu_custom_call.1} parent=27 // pred_region
          %s271 = smul.u32 2, %s20
          %s273 = ssub.s32 256, 256
          %274 = vsyncadd %s264, %s273
          %s275 = smul.addr %s271, 128
          %s276 = scalar_lea.hbm %s2, %s275
          %s278 = sshll.u32 %s267, 4
          %s279 = int_to_ptr.vmem [resolvable:$true] %s278
          %281 = dma.vmem_to_hbm [thread:$0]  %s279, 256, %s276, %s264
        $region40: #{tpu_custom_call.1} parent=27 // pred_fallthru
          _
      $region28: #{tpu_custom_call.1} parent=5 // pred_fallthru
        _
      %p282 = scmp.le.s32.totalorder 2, %s15
      // Predicated region
      $region41: #{tpu_custom_call.1} parent=5 // pred_check
        %p283 = pneg %p282
      $region42: #{tpu_custom_call.1} parent=5 // pred_check_branch
        %285 = sbr.rel (%p283) target = $region44
      $region43: #{tpu_custom_call.1} parent=5 // pred_region
        %s286 = ssub.s32 %s15, 2
        // Predicated region
        $region45: #{tpu_custom_call.1} parent=43 // pred_check
          %p287 = pneg %p91
        $region46: #{tpu_custom_call.1} parent=43 // pred_check_branch
          %289 = sbr.rel (%p287) target = $region48
        $region47: #{tpu_custom_call.1} parent=43 // pred_region
          %s290 = sand.u32 %s76, 1
          %s291 = scalar_lea.sflag [#allocation4], %s290
          %s292 = sand.u32 %s76, 1
          %s293 = smul.addr %s292, 16
          %s294 = scalar_lea.vmem [#allocation7], %s293
          %295 = dma.done %s291, 256
        $region48: #{tpu_custom_call.1} parent=43 // pred_fallthru
          _
      $region44: #{tpu_custom_call.1} parent=5 // pred_fallthru
        _
    $region6: #{tpu_custom_call.1} parent=1 // loop_footer
      %s19 = sadd.s32 1, %s15
    $region7: #{tpu_custom_call.1} parent=1 // loop_footer_branch
      %14 = sbr.rel target = $region3
    $region8: #{tpu_custom_call.1} parent=1 // loop_exit
      _
    %296 = vsyncpa [#allocation3], 1
    %s297 = scalar_lea.sflag [#allocation3], 1
    %298 = vsyncpa %s297, 1
    %299 = vsyncpa [#allocation6], 1
    %s300 = scalar_lea.sflag [#allocation6], 1
    %301 = vsyncpa %s300, 1
    %302 = vsyncpa [#allocation4], 1
    %s303 = scalar_lea.sflag [#allocation4], 1
    %304 = vsyncpa %s303, 1

</llo_original>
